<compile_context>
chip_gen: v5e
topology: v5e:2x2
jax: 0.10.0
libtpu: 0.0.40
codegen_flags: <defaults>
</compile_context>

<pallas_src>
import functools

import jax
import jax.numpy as jnp
from jax.experimental import pallas as pl
from jax.experimental.pallas import tpu as pltpu


# ---------------------------------------------------------------------------
# Helpers
# ---------------------------------------------------------------------------
def _round_up(x: int, m: int) -> int:
    return ((x + m - 1) // m) * m


def _choose_tk(D: int) -> int:
    """Feature-axis tile: full D when small, otherwise a 128-aligned divisor."""
    if D <= 4096:
        return D
    for tk in (2048, 1024, 512, 256, 128):
        if D % tk == 0:
            return tk
    return D


def _vmem_limit_bytes(footprint_bytes: int) -> int:
    """25% slack + 2 MiB for Mosaic internal scratch, capped at 40 MiB."""
    limit = int(footprint_bytes * 1.25) + (2 << 20)
    return int(min(max(limit, 4 << 20), 40 << 20))


# ---------------------------------------------------------------------------
# Pallas kernels
# ---------------------------------------------------------------------------
def _linear_kernel(x_ref, wt_ref, b_ref, o_ref, acc_ref, *, apply_sigmoid: bool):
    """K-tiled o = x @ w_t + b with optional fused sigmoid epilogue.

    x_ref  : (TM, TK)    batch x feature tile
    wt_ref : (TK, Cpad)  pre-transposed, lane-padded weight tile
    b_ref  : (1, Cpad)   lane-padded bias row (grid-invariant, single-buffered)
    o_ref  : (TM, Cpad)  lane-dense output tile
    acc_ref: (TM, Cpad)  f32 accumulator scratch
    """
    k = pl.program_id(1)

    @pl.when(k == 0)
    def _():
        acc_ref[...] = jnp.zeros_like(acc_ref)

    acc_ref[...] += jnp.dot(x_ref[...], wt_ref[...],
                            preferred_element_type=jnp.float32)

    @pl.when(k == pl.num_programs(1) - 1)
    def _():
        z = acc_ref[...] + b_ref[...].astype(jnp.float32)
        if apply_sigmoid:
            # exp -> EUP, reciprocal -> EUP: both off the VALU, ~free here.
            z = pl.reciprocal(1.0 + jnp.exp(-z), approx=False)
        o_ref[...] = z.astype(o_ref.dtype)


def _sigmoid_kernel(z_ref, p_ref):
    """p = sigmoid(z) on a lane-dense (TM, 128) slab."""
    z = z_ref[...].astype(jnp.float32)
    p_ref[...] = pl.reciprocal(1.0 + jnp.exp(-z), approx=False).astype(p_ref.dtype)


# ---------------------------------------------------------------------------
# Wrappers
# ---------------------------------------------------------------------------
def _linear_pallas(x, wt_pad, b_pad, apply_sigmoid: bool, tm: int = 512):
    """x (B, D), wt_pad (D, Cpad), b_pad (1, Cpad) -> (B, Cpad)."""
    B, D = x.shape
    Cpad = wt_pad.shape[1]
    itemsize = x.dtype.itemsize

    # >= 2 batch grid steps when possible (v7x 2 TCs); sublane-aligned (f32: 8).
    TM = min(tm, max(8, _round_up(pl.cdiv(B, 2), 8)))
    TK = _choose_tk(D)
    nB = pl.cdiv(B, TM)
    nK = pl.cdiv(D, TK)
    single_k = (nK == 1)

    # Derived VMEM footprint: X double-buffered, W^T single/double, bias single,
    # output double-buffered, f32 accumulator scratch.
    w_bufs = 1 if single_k else 2
    footprint = (itemsize * (2 * TM * TK + w_bufs * TK * Cpad + Cpad + 2 * TM * Cpad)
                 + 4 * TM * Cpad)

    cost = pl.CostEstimate(
        flops=2 * B * D * Cpad,
        transcendentals=(B * Cpad) if apply_sigmoid else 0,
        bytes_accessed=itemsize * (B * D + D * Cpad + Cpad + B * Cpad),
    )

    kernel = functools.partial(_linear_kernel, apply_sigmoid=apply_sigmoid)

    if single_k:
        # Grid-invariant weights: single-buffer (no pipelining benefit, half VMEM).
        w_spec = pl.BlockSpec((TK, Cpad), lambda i, k: (0, 0),
                              pipeline_mode=pl.Buffered(1))
    else:
        w_spec = pl.BlockSpec((TK, Cpad), lambda i, k: (k, 0))
    b_spec = pl.BlockSpec((1, Cpad), lambda i, k: (0, 0),
                          pipeline_mode=pl.Buffered(1))

    return pl.pallas_call(
        kernel,
        out_shape=jax.ShapeDtypeStruct((B, Cpad), x.dtype),
        grid_spec=pltpu.PrefetchScalarGridSpec(
            num_scalar_prefetch=0,
            grid=(nB, nK),
            in_specs=[
                pl.BlockSpec((TM, TK), lambda i, k: (i, k)),   # batch/K-tiled X
                w_spec,                                        # W^T tile
                b_spec,                                        # grid-invariant bias
            ],
            out_specs=pl.BlockSpec((TM, Cpad), lambda i, k: (i, 0)),
            scratch_shapes=[pltpu.VMEM((TM, Cpad), jnp.float32)],
        ),
        compiler_params=pltpu.CompilerParams(
            dimension_semantics=("parallel", "arbitrary"),
            vmem_limit_bytes=_vmem_limit_bytes(footprint),
        ),
        cost_estimate=cost,
    )(x, wt_pad, b_pad)


def _sigmoid_pallas(z, tm: int = 512):
    """Elementwise sigmoid over (B, C), run on a lane-dense (rows, 128) slab."""
    B, C = z.shape
    n = B * C
    LANE = 128
    rows = pl.cdiv(n, LANE)
    rows_pad = max(8, _round_up(rows, 8))
    n_pad = rows_pad * LANE

    flat = z.reshape(-1)
    if n_pad != n:
        flat = jnp.pad(flat, (0, n_pad - n))
    slab = flat.reshape(rows_pad, LANE)

    TM = min(tm, max(8, _round_up(pl.cdiv(rows_pad, 2), 8)))
    grid = (pl.cdiv(rows_pad, TM),)
    itemsize = z.dtype.itemsize
    footprint = itemsize * 4 * TM * LANE  # in + out, double-buffered

    out = pl.pallas_call(
        _sigmoid_kernel,
        out_shape=jax.ShapeDtypeStruct((rows_pad, LANE), z.dtype),
        grid_spec=pltpu.PrefetchScalarGridSpec(
            num_scalar_prefetch=0,
            grid=grid,
            in_specs=[pl.BlockSpec((TM, LANE), lambda i: (i, 0))],
            out_specs=pl.BlockSpec((TM, LANE), lambda i: (i, 0)),
        ),
        compiler_params=pltpu.CompilerParams(
            dimension_semantics=("parallel",),
            vmem_limit_bytes=_vmem_limit_bytes(footprint),
        ),
        cost_estimate=pl.CostEstimate(
            flops=n_pad, transcendentals=n_pad, bytes_accessed=2 * itemsize * n_pad),
    )(slab)
    return out.reshape(-1)[:n].reshape(B, C)


class ClassifierPallas:
    """JAX/Pallas port of the abstract `Classifier` wrapper.

    The wrapped model is a linear classifier head (W, b).
    # TODO(synk): `_classify` is @abstractmethod in the reference module — no
    # concrete semantics to translate.
    """

    def __init__(self, w, b, tm: int = 512):
        C, D = w.shape
        Cpad = _round_up(C, 128)                    # lane-dense output width
        # Weight-stationary: transpose + pad ONCE at construction time.
        self.wt_pad = jnp.zeros((D, Cpad), dtype=w.dtype).at[:, :C].set(w.T)
        self.b_pad = jnp.zeros((1, Cpad), dtype=b.dtype).at[0, :C].set(b)
        self.C = C
        self.Cpad = Cpad
        self.D = D
        self.tm = tm

    def _maybe_slice(self, out_pad):
        # Skip the (separate XLA copy) slice when no lane padding was added.
        return out_pad if self.Cpad == self.C else out_pad[:, : self.C]

    def forward(self, X):
        z_pad = _linear_pallas(X, self.wt_pad, self.b_pad,
                               apply_sigmoid=False, tm=self.tm)
        z = self._maybe_slice(z_pad)
        assert z.shape[0] == X.shape[0]
        return z

    def predict_proba(self, X):
        # Fused matmul + bias + sigmoid epilogue: one kernel, one HBM pass.
        p_pad = _linear_pallas(X, self.wt_pad, self.b_pad,
                               apply_sigmoid=True, tm=self.tm)
        return self._maybe_slice(p_pad)

    def predict_proba_scores(self, z):
        return _sigmoid_pallas(z, tm=self.tm)


# ---------------------------------------------------------------------------
# Main
# ---------------------------------------------------------------------------
if __name__ == "__main__":
    key = jax.random.PRNGKey(0)
    kx, kw, kb = jax.random.split(key, 3)

    B, D, C = 8, 32, 4  # batch, features, num_classes

    X = jax.random.normal(kx, (B, D), dtype=jnp.float32)
    # Deterministic "nn.Linear"-style init (synthetic, not a checkpoint load).
    bound = 1.0 / jnp.sqrt(jnp.float32(D))
    W = jax.random.uniform(kw, (C, D), minval=-bound, maxval=bound,
                           dtype=jnp.float32)
    b = jax.random.uniform(kb, (C,), minval=-bound, maxval=bound,
                           dtype=jnp.float32)

    clf = ClassifierPallas(W, b)

    z = clf.forward(X)                      # raw scores (matmul + bias kernel)
    p_fused = clf.predict_proba(X)          # fused matmul + bias + sigmoid
    p_scores = clf.predict_proba_scores(z)  # standalone lane-dense sigmoid
    jax.block_until_ready(z)
    jax.block_until_ready(p_fused)
    jax.block_until_ready(p_scores)

    # Correctness check against plain-JAX reference.
    z_ref = X @ W.T + b
    p_ref = jax.nn.sigmoid(z_ref)
    assert z.shape == (B, C)
    assert p_fused.shape == (B, C)
    assert p_scores.shape == (B, C)
    assert jnp.allclose(z, z_ref, atol=1e-5, rtol=1e-5)
    assert jnp.allclose(p_fused, p_ref, atol=1e-5, rtol=1e-5)
    assert jnp.allclose(p_scores, p_ref, atol=1e-5, rtol=1e-5)

    print("KERNEL_OK")
</pallas_src>

<mosaic_0001>
module attributes {stable_mosaic.version = 11 : i64} {
  func.func @_linear_kernel(%arg0: i32, %arg1: i32, %arg2: memref<8x32xf32, #tpu.memory_space<vmem>>, %arg3: memref<32x128xf32, #tpu.memory_space<vmem>>, %arg4: memref<1x128xf32, #tpu.memory_space<vmem>>, %arg5: memref<8x128xf32, #tpu.memory_space<vmem>>, %arg6: memref<8x128xf32, #tpu.memory_space<vmem>>) attributes {dimension_semantics = [#tpu.dimension_semantics<parallel>, #tpu.dimension_semantics<arbitrary>], iteration_bounds = array<i64: 1, 1>, scalar_prefetch = 0 : i64, scratch_operands = 1 : i64, tpu.core_type = #tpu.core_type<tc>, window_params = [{transform_indices = @transform_0, window_bounds = array<i64: 8, 32>}, {pipeline_mode = #tpu.pipeline_mode<synchronous>, transform_indices = @transform_1, window_bounds = array<i64: 32, 128>}, {pipeline_mode = #tpu.pipeline_mode<synchronous>, transform_indices = @transform_2, window_bounds = array<i64: 1, 128>}, {transform_indices = @transform_3, window_bounds = array<i64: 8, 128>}]} {
    %c0_i32 = arith.constant 0 : i32
    %0 = arith.cmpi eq, %arg1, %c0_i32 : i32
    %1 = arith.extui %0 : i1 to i32
    %c0_i32_0 = arith.constant 0 : i32
    %2 = arith.cmpi ne, %1, %c0_i32_0 : i32
    scf.if %2 {
      %cst_10 = arith.constant 0.000000e+00 : f32
      %12 = vector.broadcast %cst_10 : f32 to vector<8x128xf32>
      %c0_11 = arith.constant 0 : index
      %c0_12 = arith.constant 0 : index
      %13 = vector.load %arg6[%c0_11, %c0_12] : memref<8x128xf32, #tpu.memory_space<vmem>>, vector<8x128xf32>
      tpu.vector_store %arg6[%c0_11, %c0_12], %12 {strides = array<i32>} : memref<8x128xf32, #tpu.memory_space<vmem>>, vector<8x128xf32>,
    } else {
    }
    %c0 = arith.constant 0 : index
    %c0_1 = arith.constant 0 : index
    %3 = vector.load %arg6[%c0, %c0_1] : memref<8x128xf32, #tpu.memory_space<vmem>>, vector<8x128xf32>
    %c0_2 = arith.constant 0 : index
    %c0_3 = arith.constant 0 : index
    %4 = vector.load %arg2[%c0_2, %c0_3] : memref<8x32xf32, #tpu.memory_space<vmem>>, vector<8x32xf32>
    %c0_4 = arith.constant 0 : index
    %c0_5 = arith.constant 0 : index
    %5 = vector.load %arg3[%c0_4, %c0_5] : memref<32x128xf32, #tpu.memory_space<vmem>>, vector<32x128xf32>
    %cst = arith.constant dense<0.000000e+00> : vector<8x128xf32>
    %6 = tpu.matmul %4, %5, %cst {dimension_numbers = #tpu.dot_dimension_numbers<[1], [0], [0], [1], [0, 0, 1, 1], [], []>} : vector<8x32xf32>, vector<32x128xf32>, vector<8x128xf32> -> vector<8x128xf32>
    %7 = arith.addf %3, %6 : vector<8x128xf32>
    %c0_6 = arith.constant 0 : index
    %c0_7 = arith.constant 0 : index
    %8 = vector.load %arg6[%c0_6, %c0_7] : memref<8x128xf32, #tpu.memory_space<vmem>>, vector<8x128xf32>
    tpu.vector_store %arg6[%c0_6, %c0_7], %7 {strides = array<i32>} : memref<8x128xf32, #tpu.memory_space<vmem>>, vector<8x128xf32>,
    %c0_i32_8 = arith.constant 0 : i32
    %9 = arith.cmpi eq, %arg1, %c0_i32_8 : i32
    %10 = arith.extui %9 : i1 to i32
    %c0_i32_9 = arith.constant 0 : i32
    %11 = arith.cmpi ne, %10, %c0_i32_9 : i32
    scf.if %11 {
      %c0_10 = arith.constant 0 : index
      %c0_11 = arith.constant 0 : index
      %12 = vector.load %arg6[%c0_10, %c0_11] : memref<8x128xf32, #tpu.memory_space<vmem>>, vector<8x128xf32>
      %c0_12 = arith.constant 0 : index
      %c0_13 = arith.constant 0 : index
      %13 = vector.load %arg4[%c0_12, %c0_13] : memref<1x128xf32, #tpu.memory_space<vmem>>, vector<1x128xf32>
      %14 = vector.broadcast %13 : vector<1x128xf32> to vector<8x128xf32>
      %15 = arith.addf %12, %14 : vector<8x128xf32>
      %c0_14 = arith.constant 0 : index
      %c0_15 = arith.constant 0 : index
      %16 = vector.load %arg5[%c0_14, %c0_15] : memref<8x128xf32, #tpu.memory_space<vmem>>, vector<8x128xf32>
      tpu.vector_store %arg5[%c0_14, %c0_15], %15 {strides = array<i32>} : memref<8x128xf32, #tpu.memory_space<vmem>>, vector<8x128xf32>,
    } else {
    }
    return
  }
  func.func @transform_0(%arg0: i32, %arg1: i32) -> (i32, i32) {
    %c0_i32 = arith.constant 0 : i32
    return %arg0, %arg1 : i32, i32
  }
  func.func @transform_1(%arg0: i32, %arg1: i32) -> (i32, i32) {
    %c0_i32 = arith.constant 0 : i32
    %c0_i32_0 = arith.constant 0 : i32
    %c0_i32_1 = arith.constant 0 : i32
    return %c0_i32, %c0_i32_0 : i32, i32
  }
  func.func @transform_2(%arg0: i32, %arg1: i32) -> (i32, i32) {
    %c0_i32 = arith.constant 0 : i32
    %c0_i32_0 = arith.constant 0 : i32
    %c0_i32_1 = arith.constant 0 : i32
    return %c0_i32, %c0_i32_0 : i32, i32
  }
  func.func @transform_3(%arg0: i32, %arg1: i32) -> (i32, i32) {
    %c0_i32 = arith.constant 0 : i32
    %c0_i32_0 = arith.constant 0 : i32
    return %arg0, %c0_i32 : i32, i32
  }
}

</mosaic_0001>

<llo_original>
// kernel: tpu_custom_call.1
$region0: #{tpu_custom_call.1}
  #allocation0 [shape = 'u32[]', space=smem, size = 0x4, offset = 0x4, fixed_abs, tag = 'smem constant byte address 0x4 - core index']
  #allocation1 [shape = 'u32[72,128]{1,0:T(1,128)}', space=vmem, size = 0x9000, scoped, tag = 'internal scratch']
  #allocation2 [shape = 'f32[8,128]{1,0:T(8,128)}', space=vmem, size = 0x1000, scoped, tag = 'scratch operand']
  %s0 = inlined_call_operand.hbm [shape: f32[8,32], index: 0, kind: input, shape index: {}]
  %s1 = inlined_call_operand.hbm [shape: f32[32,128], index: 1, kind: input, shape index: {}]
  %s2 = inlined_call_operand.vmem [shape: f32[1,128], index: 2, kind: input, shape index: {}]
  %s3 = inlined_call_operand.hbm [shape: f32[8,128], index: 3, kind: output, shape index: {}]
  %s4 = sld [smem:[#allocation0]]
  $region38: #{tpu_custom_call.1} parent=0
    _
  %s6 = ssub.s32 1, %s4
  %s7 = scalar_select 0, %s6, %s4
  $region1: #{tpu_custom_call.1} parent=0
    #allocation3 [shape = 'u8[4096]{0}', space=vmem, size = 0x1000, scoped, tag = 'input window, operand 0, single buffered']
    #allocation4 [shape = 's32[1]{0}', space=sflag, size = 0x4, scoped, tag = 'scoped memory for tpu_custom_call.1']
    #allocation5 [shape = 's32[1]{0}', space=sflag, size = 0x4, scoped, tag = 'scoped memory for tpu_custom_call.1']
    #allocation6 [shape = 'u8[16384]{0}', space=vmem, size = 0x4000, scoped, tag = 'input window, operand 1, single buffered']
    #allocation7 [shape = 's32[1]{0}', space=sflag, size = 0x4, scoped, tag = 'scoped memory for tpu_custom_call.1']
    #allocation8 [shape = 'u8[4096]{0}', space=vmem, size = 0x1000, scoped, tag = 'output window, operand 0, single buffered']
    %8 = vsyncpa [#allocation4], 0
    %9 = vsyncpa [#allocation7], 0
    %10 = vsyncpa [#allocation5], 0
    // Predicated region
    $region2: #{tpu_custom_call.1} parent=1 // pred_check
      _
    $region3: #{tpu_custom_call.1} parent=1 // pred_check_branch
      %12 = sbr.rel (0) target = $region5
    $region4: #{tpu_custom_call.1} parent=1 // pred_region
      %14 = vsyncadd [#allocation4], 0
      %s16 = sshll.u32 %s0, 4
      %s17 = int_to_ptr.hbm [resolvable:$true] %s16
      %s18 = sshll.u32 [#allocation3], 4
      %s19 = int_to_ptr.vmem [resolvable:$true] %s18
      %21 = dma.hbm_to_vmem [thread:$0]  %s17, 128, %s19, [#allocation4]
    $region5: #{tpu_custom_call.1} parent=1 // pred_fallthru
      _
    // Predicated region
    $region6: #{tpu_custom_call.1} parent=1 // pred_check
      _
    $region7: #{tpu_custom_call.1} parent=1 // pred_check_branch
      %23 = sbr.rel (0) target = $region9
    $region8: #{tpu_custom_call.1} parent=1 // pred_region
      %25 = vsyncadd [#allocation7], 0
      %s26 = sshll.u32 %s1, 4
      %s27 = int_to_ptr.hbm [resolvable:$true] %s26
      %s28 = sshll.u32 [#allocation6], 4
      %s29 = int_to_ptr.vmem [resolvable:$true] %s28
      %34 = dma.hbm_to_vmem [thread:$0]  %s27, 512, %s29, [#allocation7], 128, 128, 8
    $region9: #{tpu_custom_call.1} parent=1 // pred_fallthru
      _
    // Predicated region
    $region10: #{tpu_custom_call.1} parent=1 // pred_check
      _
    $region11: #{tpu_custom_call.1} parent=1 // pred_check_branch
      %36 = sbr.rel (0) target = $region13
    $region12: #{tpu_custom_call.1} parent=1 // pred_region
      _
    $region13: #{tpu_custom_call.1} parent=1 // pred_fallthru
      _
    // Predicated region
    $region14: #{tpu_custom_call.1} parent=1 // pred_check
      _
    $region15: #{tpu_custom_call.1} parent=1 // pred_check_branch
      %38 = sbr.rel (0) target = $region17
    $region16: #{tpu_custom_call.1} parent=1 // pred_region
      %40 = dma.done [#allocation4], 128
    $region17: #{tpu_custom_call.1} parent=1 // pred_fallthru
      _
    // Predicated region
    $region18: #{tpu_custom_call.1} parent=1 // pred_check
      _
    $region19: #{tpu_custom_call.1} parent=1 // pred_check_branch
      %42 = sbr.rel (0) target = $region21
    $region20: #{tpu_custom_call.1} parent=1 // pred_region
      %44 = dma.done [#allocation7], 512
    $region21: #{tpu_custom_call.1} parent=1 // pred_fallthru
      _
    %p45 = scmp.eq.s32.totalorder 0, 0
    // Predicated region
    $region22: #{tpu_custom_call.1} parent=1 // pred_check
      %p46 = pneg %p45
    $region23: #{tpu_custom_call.1} parent=1 // pred_check_branch
      %48 = sbr.rel (%p46) target = $region25
    $region24: #{tpu_custom_call.1} parent=1 // pred_region
      %49 = vst [vmem:[#allocation2] sm:$0xff] 0.0
    $region25: #{tpu_custom_call.1} parent=1 // pred_fallthru
      _
    %v50 = vld [vmem:[#allocation2] sm:$0xff]
    %v51 = vld [vmem:[#allocation3] sm:$0xff]
    %v52 = vld [vmem:[#allocation6] sm:$0xff]
    %v53 = vld [vmem:[#allocation6 + $0x8] sm:$0xff]
    %v54 = vld [vmem:[#allocation6 + $0x10] sm:$0xff]
    %v55 = vld [vmem:[#allocation6 + $0x18] sm:$0xff]
    %vm56 = vcmask 261120
    %v58 = vsel %vm56, %v51, 0
    %60 = vmatpush.msra.mxu0 0.0
    %61 = vmatpush.msra.mxu0 0.0
    %62 = vmatpush.msra.mxu0 0.0
    %63 = vmatpush.msra.mxu0 0.0
    %64 = vmatpush.msra.mxu0 0.0
    %65 = vmatpush.msra.mxu0 0.0
    %66 = vmatpush.msra.mxu0 0.0
    %67 = vmatpush.msra.mxu0 0.0
    %68 = vmatpush.msra.mxu0 0.0
    %69 = vmatpush.msra.mxu0 0.0
    %70 = vmatpush.msra.mxu0 0.0
    %71 = vmatpush.msra.mxu0 0.0
    %72 = vmatpush.msra.mxu0 %v55
    %73 = vmatpush.msra.mxu0 %v54
    %74 = vmatpush.msra.mxu0 %v53
    %75 = vmatpush.msra.mxu0 %v52
    %76 = vmatmul.f32.gmra.mxu0 %v58
    %v77 = vpop.f32.mrf.mxu0
    %v78 = vadd.f32 0.0, %v77
    %79 = vdwg.mxu0
    %v80 = vadd.f32 %v50, %v78
    %81 = vst [vmem:[#allocation2] sm:$0xff] %v80
    // Predicated region
    $region26: #{tpu_custom_call.1} parent=1 // pred_check
      %p82 = pneg %p45
    $region27: #{tpu_custom_call.1} parent=1 // pred_check_branch
      %84 = sbr.rel (%p82) target = $region29
    $region28: #{tpu_custom_call.1} parent=1 // pred_region
      %v85 = vld [vmem:[#allocation2] sm:$0xff]
      %v86 = vld [vmem:[%s2] sm:$0x1]
      %v88 = vperm.slane %v86, 0
      %v90 = vadd.f32 %v85, %v88
      %91 = vst [vmem:[#allocation8] sm:$0xff] %v90
    $region29: #{tpu_custom_call.1} parent=1 // pred_fallthru
      _
    // Predicated region
    $region30: #{tpu_custom_call.1} parent=1 // pred_check
      _
    $region31: #{tpu_custom_call.1} parent=1 // pred_check_branch
      %93 = sbr.rel (0) target = $region33
    $region32: #{tpu_custom_call.1} parent=1 // pred_region
      %95 = vsyncadd [#allocation5], 0
      %s97 = sshll.u32 [#allocation8], 4
      %s98 = int_to_ptr.vmem [resolvable:$true] %s97
      %s99 = sshll.u32 %s3, 4
      %s100 = int_to_ptr.hbm [resolvable:$true] %s99
      %102 = dma.vmem_to_hbm [thread:$0]  %s98, 128, %s100, [#allocation5]
    $region33: #{tpu_custom_call.1} parent=1 // pred_fallthru
      _
    // Predicated region
    $region34: #{tpu_custom_call.1} parent=1 // pred_check
      _
    $region35: #{tpu_custom_call.1} parent=1 // pred_check_branch
      %104 = sbr.rel (0) target = $region37
    $region36: #{tpu_custom_call.1} parent=1 // pred_region
      %106 = dma.done [#allocation5], 128
    $region37: #{tpu_custom_call.1} parent=1 // pred_fallthru
      _
    %107 = vsyncpa [#allocation4], 1
    %108 = vsyncpa [#allocation7], 1
    %109 = vsyncpa [#allocation5], 1

</llo_original>
